<compile_context>
chip_gen: v6e
topology: v6e:2x2x1
jax: 0.10.0
libtpu: 0.0.40
codegen_flags: <defaults>
</compile_context>

<pallas_src>
import functools

import jax
import jax.numpy as jnp
from jax.experimental import pallas as pl
from jax.experimental.pallas import tpu as pltpu


def rmsnorm_kernel(x_ref, gamma_ref, alpha_ref, o_ref, *, inv_d,
                   low_precision_affine):
    # x_ref: (TM, D), gamma_ref/alpha_ref: (1, D), o_ref: (TM, D)
    x = x_ref[...]
    xf = x.astype(jnp.float32)

    # mean(x**2) = sum(x**2) * (1/D); 1/D folded as a compile-time constant.
    ms = jnp.sum(xf * xf, axis=-1, keepdims=True) * inv_d        # (TM, 1) f32
    rms = jnp.sqrt(ms)                                           # (TM, 1) f32
    # Exact per-row reciprocal; eps on rms (not ms) matches PyTorch exactly.
    inv = pl.reciprocal(rms + 1e-8, approx=False)                # (TM, 1) f32

    if low_precision_affine:
        # v6e/v7x with bf16-class inputs: affine path in the input dtype
        # (gamma/alpha already cast in the wrapper); only the reduction above
        # is f32. Fewer VALU ops/element + half the live VMEM.
        out = x * inv.astype(x.dtype) * gamma_ref[...] + alpha_ref[...]
    else:
        out = (xf * inv * gamma_ref[...].astype(jnp.float32)
               + alpha_ref[...].astype(jnp.float32))
    o_ref[...] = out.astype(o_ref.dtype)


def _tpu_vmem_capacity_bytes():
    try:
        return int(pltpu.get_tpu_info().vmem_capacity_bytes)
    except Exception:
        return 64 << 20          # conservative (v7x-sized) fallback


def _chip_has_low_precision_vpu():
    # v6e / v7x VPUs have bf16 VALU lanes; v5e and older do not, so the
    # low-precision affine path is only enabled on v6+ chips.
    try:
        kind = jax.devices()[0].device_kind.lower()
    except Exception:
        return False
    for old in ("v2", "v3", "v4", "v5"):
        if old in kind:
            return False
    return "tpu" in kind


def _pick_row_tile(rows, d, itemsize, desired, budget_bytes):
    """Row tile: multiple of the sublane pack factor, capped by a VMEM budget
    that models double-buffered in/out tiles plus in-kernel f32 temporaries."""
    pack = 8 * max(1, 4 // itemsize)         # f32 -> 8, bf16 -> 16, int8 -> 32
    if rows <= pack:
        return rows                          # full-array block: always legal
    # Per-row live bytes: 2x in + 2x out buffers (itemsize each) + ~2
    # tile-sized f32 temporaries (upcast / result before downcast).
    per_row_bytes = d * (4 * itemsize + 8)
    max_tm = max(pack, budget_bytes // max(1, per_row_bytes))
    tm = min(desired, rows, max_tm)
    tm = max(pack, (tm // pack) * pack)      # keep sublane-dense tiles
    # Force >= 2 grid steps when rows allow it so the "parallel" row axis can
    # actually be split across both TensorCores on v7x (no cost on 1-TC chips:
    # the cap only triggers when the whole problem fits in 1-2 tiles anyway).
    if rows >= 2 * pack:
        half = ((rows + 1) // 2 + pack - 1) // pack * pack
        tm = min(tm, max(pack, half))
    return tm


def rmsnorm(x, gamma, alpha, *, row_tile=512):
    """x: (..., D); gamma, alpha: (D,). Matches PyTorch RMSNorm.forward:
       gamma * x / (sqrt(mean(x**2, -1)) + 1e-8) + alpha."""
    orig_shape = x.shape
    D = orig_shape[-1]
    rows = 1
    for s in orig_shape[:-1]:
        rows *= s
    x2d = x.reshape(rows, D)

    itemsize = jnp.dtype(x.dtype).itemsize
    vmem_cap = _tpu_vmem_capacity_bytes()
    # Tile budget ~12-16 MiB: big enough to sit on the HBM roofline, small
    # enough to leave double-buffering headroom inside v7x's 64 MiB VMEM.
    tile_budget = min(16 << 20, vmem_cap // 4)
    tm = _pick_row_tile(rows, D, itemsize, row_tile, tile_budget)
    grid = (pl.cdiv(rows, tm),)              # ragged last block handled by Pallas

    low_precision_affine = (itemsize < 4) and _chip_has_low_precision_vpu()
    param_dtype = x.dtype if low_precision_affine else jnp.float32
    gamma2d = gamma.reshape(1, D).astype(param_dtype)
    alpha2d = alpha.reshape(1, D).astype(param_dtype)

    kernel = functools.partial(rmsnorm_kernel, inv_d=1.0 / float(D),
                               low_precision_affine=low_precision_affine)

    # Derive the scoped-VMEM limit from the chosen tile (double-buffered I/O
    # + f32 temporaries + params) plus compiler margin; cap under physical
    # VMEM so v7x keeps headroom while v5e still gets its raise over the
    # 16 MiB default scoped limit.
    tile_bytes = tm * D * (4 * itemsize + 8)
    param_bytes = 2 * D * jnp.dtype(param_dtype).itemsize
    vmem_limit = tile_bytes + param_bytes + (8 << 20)
    vmem_limit = int(max(24 << 20, min(vmem_limit, (vmem_cap * 5) // 8, 48 << 20)))

    cost = pl.CostEstimate(
        flops=5 * rows * D,                  # x*x, reduce-add, x*inv, *gamma, +alpha
        transcendentals=2 * rows,            # sqrt + reciprocal per row
        bytes_accessed=2 * rows * D * itemsize + 2 * param_bytes,
    )

    # TODO(synk): for lane-sparse D (< 128 or not a multiple of 128) the output
    # stores are masked (partial-lane); folding several rows into the lane axis
    # would recover full lane width if such shapes ever become hot.
    out2d = pl.pallas_call(
        kernel,
        out_shape=jax.ShapeDtypeStruct((rows, D), x.dtype),
        grid_spec=pltpu.PrefetchScalarGridSpec(
            num_scalar_prefetch=0,
            grid=grid,
            in_specs=[
                pl.BlockSpec((tm, D), lambda i: (i, 0)),
                pl.BlockSpec((1, D), lambda i: (0, 0)),   # constant map: DMA'd once
                pl.BlockSpec((1, D), lambda i: (0, 0)),
            ],
            out_specs=pl.BlockSpec((tm, D), lambda i: (i, 0)),
        ),
        compiler_params=pltpu.CompilerParams(
            dimension_semantics=("parallel",),            # megacore-shard the rows
            vmem_limit_bytes=vmem_limit,
        ),
        cost_estimate=cost,
    )(x2d, gamma2d, alpha2d)

    return out2d.reshape(orig_shape)


if __name__ == "__main__":
    # Small shapes implied by the module: (batch, seq, hidden)
    batch, seq, hidden = 2, 8, 32

    key = jax.random.PRNGKey(0)
    x = jax.random.normal(key, (batch, seq, hidden), dtype=jnp.float32)

    # Deterministic parameters matching nn.Parameter init in __init__:
    alpha = jnp.zeros((hidden,), dtype=jnp.float32)
    gamma = jnp.ones((hidden,), dtype=jnp.float32)

    def ref_fn(xv):
        xf = xv.astype(jnp.float32)
        rms = jnp.sqrt(jnp.mean(xf ** 2, axis=-1, keepdims=True))
        return (gamma * xf / (rms + 1e-8) + alpha).astype(xv.dtype)

    out = jax.block_until_ready(rmsnorm(x, gamma, alpha))
    assert out.shape == x.shape
    assert jnp.allclose(out, ref_fn(x), atol=1e-5, rtol=1e-5), "mismatch vs reference"

    # Ragged last row-block check (rows=9, tm=8 -> masked final block; verifies
    # padded garbage rows never leak into valid output rows).
    x2 = jax.random.normal(jax.random.PRNGKey(1), (3, 3, hidden), dtype=jnp.float32)
    out2 = jax.block_until_ready(rmsnorm(x2, gamma, alpha))
    assert out2.shape == x2.shape
    assert bool(jnp.isfinite(out2).all())
    assert jnp.allclose(out2, ref_fn(x2), atol=1e-5, rtol=1e-5), "ragged-block mismatch"

    print("KERNEL_OK")
</pallas_src>

<mosaic_0001>
module attributes {stable_mosaic.version = 11 : i64} {
  func.func @rmsnorm_kernel(%arg0: i32, %arg1: memref<8x32xf32, #tpu.memory_space<vmem>>, %arg2: memref<1x32xf32, #tpu.memory_space<vmem>>, %arg3: memref<1x32xf32, #tpu.memory_space<vmem>>, %arg4: memref<8x32xf32, #tpu.memory_space<vmem>>) attributes {dimension_semantics = [#tpu.dimension_semantics<parallel>], iteration_bounds = array<i64: 2>, scalar_prefetch = 0 : i64, scratch_operands = 0 : i64, tpu.core_type = #tpu.core_type<tc>, window_params = [{transform_indices = @transform_0, window_bounds = array<i64: 8, 32>}, {pipeline_mode = #tpu.pipeline_mode<synchronous>, transform_indices = @transform_1, window_bounds = array<i64: 1, 32>}, {pipeline_mode = #tpu.pipeline_mode<synchronous>, transform_indices = @transform_2, window_bounds = array<i64: 1, 32>}, {transform_indices = @transform_3, window_bounds = array<i64: 8, 32>}]} {
    %c0 = arith.constant 0 : index
    %c0_0 = arith.constant 0 : index
    %0 = vector.load %arg1[%c0, %c0_0] : memref<8x32xf32, #tpu.memory_space<vmem>>, vector<8x32xf32>
    %1 = arith.mulf %0, %0 : vector<8x32xf32>
    %cst = arith.constant dense<0.000000e+00> : vector<8xf32>
    %2 = vector.multi_reduction <add>, %1, %cst [1] : vector<8x32xf32> to vector<8xf32>
    %3 = vector.shape_cast %2 : vector<8xf32> to vector<8x1xf32>
    %cst_1 = arith.constant 3.125000e-02 : f32
    %4 = vector.broadcast %cst_1 : f32 to vector<8x1xf32>
    %5 = arith.mulf %3, %4 : vector<8x1xf32>
    %6 = math.sqrt %5 : vector<8x1xf32>
    %cst_2 = arith.constant 9.99999993E-9 : f32
    %7 = vector.broadcast %cst_2 : f32 to vector<8x1xf32>
    %8 = arith.addf %6, %7 : vector<8x1xf32>
    %9 = tpu.reciprocal %8 : vector<8x1xf32> -> vector<8x1xf32>
    %10 = vector.broadcast %9 : vector<8x1xf32> to vector<8x32xf32>
    %11 = arith.mulf %0, %10 : vector<8x32xf32>
    %c0_3 = arith.constant 0 : index
    %c0_4 = arith.constant 0 : index
    %12 = vector.load %arg2[%c0_3, %c0_4] : memref<1x32xf32, #tpu.memory_space<vmem>>, vector<1x32xf32>
    %13 = vector.broadcast %12 : vector<1x32xf32> to vector<8x32xf32>
    %14 = arith.mulf %11, %13 : vector<8x32xf32>
    %c0_5 = arith.constant 0 : index
    %c0_6 = arith.constant 0 : index
    %15 = vector.load %arg3[%c0_5, %c0_6] : memref<1x32xf32, #tpu.memory_space<vmem>>, vector<1x32xf32>
    %16 = vector.broadcast %15 : vector<1x32xf32> to vector<8x32xf32>
    %17 = arith.addf %14, %16 : vector<8x32xf32>
    %c0_7 = arith.constant 0 : index
    %c0_8 = arith.constant 0 : index
    %18 = vector.load %arg4[%c0_7, %c0_8] : memref<8x32xf32, #tpu.memory_space<vmem>>, vector<8x32xf32>
    tpu.vector_store %arg4[%c0_7, %c0_8], %17 {strides = array<i32>} : memref<8x32xf32, #tpu.memory_space<vmem>>, vector<8x32xf32>,
    return
  }
  func.func @transform_0(%arg0: i32) -> (i32, i32) {
    %c0_i32 = arith.constant 0 : i32
    %c0_i32_0 = arith.constant 0 : i32
    return %arg0, %c0_i32 : i32, i32
  }
  func.func @transform_1(%arg0: i32) -> (i32, i32) {
    %c0_i32 = arith.constant 0 : i32
    %c0_i32_0 = arith.constant 0 : i32
    %c0_i32_1 = arith.constant 0 : i32
    return %c0_i32, %c0_i32_0 : i32, i32
  }
  func.func @transform_2(%arg0: i32) -> (i32, i32) {
    %c0_i32 = arith.constant 0 : i32
    %c0_i32_0 = arith.constant 0 : i32
    %c0_i32_1 = arith.constant 0 : i32
    return %c0_i32, %c0_i32_0 : i32, i32
  }
  func.func @transform_3(%arg0: i32) -> (i32, i32) {
    %c0_i32 = arith.constant 0 : i32
    %c0_i32_0 = arith.constant 0 : i32
    return %arg0, %c0_i32 : i32, i32
  }
}

</mosaic_0001>

<llo_original>
// kernel: tpu_custom_call.1
$region0: #{tpu_custom_call.1}
  #allocation0 [shape = 'u32[]', space=smem, size = 0x4, offset = 0x4, fixed_abs, tag = 'smem constant byte address 0x4 - core index']
  #allocation1 [shape = 'u32[144,128]{1,0:T(1,128)}', space=vmem, size = 0x12000, scoped, tag = 'internal scratch']
  %s0 = inlined_call_operand.hbm [shape: f32[16,32], index: 0, kind: input, shape index: {}]
  %s1 = inlined_call_operand.vmem [shape: f32[1,32], index: 1, kind: input, shape index: {}]
  %s2 = inlined_call_operand.vmem [shape: f32[1,32], index: 2, kind: input, shape index: {}]
  %s3 = inlined_call_operand.hbm [shape: f32[16,32], index: 3, kind: output, shape index: {}]
  %s4 = sld [smem:[#allocation0]]
  $region49: #{tpu_custom_call.1} parent=0
    _
  %s6 = ssub.s32 1, %s4
  %s7 = scalar_select 0, %s6, %s4
  $region1: #{tpu_custom_call.1} parent=0
    #allocation2 [shape = 'u8[8192]{0}', space=vmem, size = 0x2000, scoped, tag = 'input window, operand 0']
    #allocation3 [shape = 's32[2]{0}', space=sflag, size = 0x8, scoped, tag = 'scoped memory for tpu_custom_call.1']
    #allocation4 [shape = 's32[2]{0}', space=sflag, size = 0x8, scoped, tag = 'scoped memory for tpu_custom_call.1']
    #allocation5 [shape = 'u8[8192]{0}', space=vmem, size = 0x2000, scoped, tag = 'output window, operand 0']
    %8 = vsyncpa [#allocation3], 0
    %s9 = scalar_lea.sflag [#allocation3], 1
    %10 = vsyncpa %s9, 0
    %11 = vsyncpa [#allocation4], 0
    %s12 = scalar_lea.sflag [#allocation4], 1
    %13 = vsyncpa %s12, 0
    loop: start=0, step=1, limit=4
    $region2: #{tpu_custom_call.1} parent=1 // loop_pre_header
      _
    $region3: #{tpu_custom_call.1} parent=1 // loop_header
      %s15 = sphi 0, %s19
      %p16 = scmp.ge.s32.totalorder %s15, 4
      %s25 = sphi 0, %s27
      %s28 = sphi 0, %s25
      %s29 = sphi 0, %s28
      %s45 = sphi 0, %s29
      %s49 = sphi 0, %s49
      %s51 = sphi 0, %s49
      %s52 = sphi 0, %s51
      %s66 = sphi 0, %s52
      %s70 = sphi 0, %s70
      %s72 = sphi 0, %s70
      %s73 = sphi 0, %s72
      %s87 = sphi 0, %s73
      %s93 = sphi 0, %s95
      %s96 = sphi 0, %s93
      %s97 = sphi 0, %s96
      %s113 = sphi 0, %s97
    $region4: #{tpu_custom_call.1} parent=1 // loop_header_branch
      %18 = sbr.rel (%p16) target = $region8
    $region5: #{tpu_custom_call.1} parent=1 // loop_body
      %s20 = ssub.s32 %s15, 1
      %s21 = ssub.s32 %s15, 2
      %s22 = sadd.s32 %s15, 1
      %s23 = ssub.s32 %s15, %s22
      %p24 = scmp.eq.s32.totalorder %s23, 0
      %s26 = sadd.s32 %s25, 1
      %s27 = scalar_select %p24, %s25, %s26
      %p30 = pneg %p24
      %p31 = scmp.eq.s32.totalorder %s15, 1
      %p32 = por %p30, %p31
      %p33 = scmp.ne.s32.totalorder %s25, %s28
      %p34 = scmp.eq.s32.totalorder %s15, 0
      %p35 = por %p33, %p34
      %p36 = scmp.ne.s32.totalorder %s25, %s28
      %p37 = scmp.eq.s32.totalorder %s20, 1
      %p38 = por %p36, %p37
      %p39 = scmp.ne.s32.totalorder %s28, %s29
      %p40 = scmp.eq.s32.totalorder %s20, 0
      %p41 = por %p39, %p40
      %p42 = scmp.ne.s32.totalorder %s28, %s29
      %p43 = scmp.eq.s32.totalorder %s21, 1
      %p44 = por %p42, %p43
      %p46 = scmp.ne.s32.totalorder %s29, %s45
      %p47 = scmp.eq.s32.totalorder %s21, 0
      %p48 = por %p46, %p47
      %s50 = sadd.s32 %s49, 1
      %p53 = scmp.eq.s32.totalorder %s15, 1
      %p54 = scmp.ne.s32.totalorder %s49, %s51
      %p55 = scmp.eq.s32.totalorder %s15, 0
      %p56 = por %p54, %p55
      %p57 = scmp.ne.s32.totalorder %s49, %s51
      %p58 = scmp.eq.s32.totalorder %s20, 1
      %p59 = por %p57, %p58
      %p60 = scmp.ne.s32.totalorder %s51, %s52
      %p61 = scmp.eq.s32.totalorder %s20, 0
      %p62 = por %p60, %p61
      %p63 = scmp.ne.s32.totalorder %s51, %s52
      %p64 = scmp.eq.s32.totalorder %s21, 1
      %p65 = por %p63, %p64
      %p67 = scmp.ne.s32.totalorder %s52, %s66
      %p68 = scmp.eq.s32.totalorder %s21, 0
      %p69 = por %p67, %p68
      %s71 = sadd.s32 %s70, 1
      %p74 = scmp.eq.s32.totalorder %s15, 1
      %p75 = scmp.ne.s32.totalorder %s70, %s72
      %p76 = scmp.eq.s32.totalorder %s15, 0
      %p77 = por %p75, %p76
      %p78 = scmp.ne.s32.totalorder %s70, %s72
      %p79 = scmp.eq.s32.totalorder %s20, 1
      %p80 = por %p78, %p79
      %p81 = scmp.ne.s32.totalorder %s72, %s73
      %p82 = scmp.eq.s32.totalorder %s20, 0
      %p83 = por %p81, %p82
      %p84 = scmp.ne.s32.totalorder %s72, %s73
      %p85 = scmp.eq.s32.totalorder %s21, 1
      %p86 = por %p84, %p85
      %p88 = scmp.ne.s32.totalorder %s73, %s87
      %p89 = scmp.eq.s32.totalorder %s21, 0
      %p90 = por %p88, %p89
      %s91 = ssub.s32 %s15, %s22
      %p92 = scmp.eq.s32.totalorder %s91, 0
      %s94 = sadd.s32 %s93, 1
      %s95 = scalar_select %p92, %s93, %s94
      %p98 = pneg %p92
      %p99 = scmp.eq.s32.totalorder %s15, 1
      %p100 = por %p98, %p99
      %p101 = scmp.ne.s32.totalorder %s93, %s96
      %p102 = scmp.eq.s32.totalorder %s15, 0
      %p103 = por %p101, %p102
      %p104 = scmp.ne.s32.totalorder %s93, %s96
      %p105 = scmp.eq.s32.totalorder %s20, 1
      %p106 = por %p104, %p105
      %p107 = scmp.ne.s32.totalorder %s96, %s97
      %p108 = scmp.eq.s32.totalorder %s20, 0
      %p109 = por %p107, %p108
      %p110 = scmp.ne.s32.totalorder %s96, %s97
      %p111 = scmp.eq.s32.totalorder %s21, 1
      %p112 = por %p110, %p111
      %p114 = scmp.ne.s32.totalorder %s97, %s113
      %p115 = scmp.eq.s32.totalorder %s21, 0
      %p116 = por %p114, %p115
      %p117 = scmp.le.s32.totalorder 1, %s15
      %p118 = scmp.lt.s32.totalorder %s15, 3
      %p119 = pnand %p117, %p118
      %p120 = pneg %p119
      // Predicated region
      $region9: #{tpu_custom_call.1} parent=5 // pred_check
        _
      $region10: #{tpu_custom_call.1} parent=5 // pred_check_branch
        %122 = sbr.rel (%p119) target = $region12
      $region11: #{tpu_custom_call.1} parent=5 // pred_region
        %s123 = ssub.s32 %s15, 1
        // Predicated region
        $region13: #{tpu_custom_call.1} parent=11 // pred_check
          %p124 = pneg %p62
        $region14: #{tpu_custom_call.1} parent=11 // pred_check_branch
          %126 = sbr.rel (%p124) target = $region16
        $region15: #{tpu_custom_call.1} parent=11 // pred_region
          _
        $region16: #{tpu_custom_call.1} parent=11 // pred_fallthru
          _
        // Predicated region
        $region17: #{tpu_custom_call.1} parent=11 // pred_check
          %p127 = pneg %p83
        $region18: #{tpu_custom_call.1} parent=11 // pred_check_branch
          %129 = sbr.rel (%p127) target = $region20
        $region19: #{tpu_custom_call.1} parent=11 // pred_region
          _
        $region20: #{tpu_custom_call.1} parent=11 // pred_fallthru
          _
      $region12: #{tpu_custom_call.1} parent=5 // pred_fallthru
        _
      %p130 = scmp.lt.s32.totalorder %s15, 2
      // Predicated region
      $region21: #{tpu_custom_call.1} parent=5 // pred_check
        %p131 = pneg %p130
      $region22: #{tpu_custom_call.1} parent=5 // pred_check_branch
        %133 = sbr.rel (%p131) target = $region24
      $region23: #{tpu_custom_call.1} parent=5 // pred_region
        // Predicated region
        $region25: #{tpu_custom_call.1} parent=23 // pred_check
          %p134 = pneg %p35
        $region26: #{tpu_custom_call.1} parent=23 // pred_check_branch
          %136 = sbr.rel (%p134) target = $region28
        $region27: #{tpu_custom_call.1} parent=23 // pred_region
          %s137 = sand.u32 %s25, 1
          %s138 = scalar_lea.sflag [#allocation3], %s137
          %s139 = sand.u32 %s25, 1
          %s140 = smul.addr %s139, 8
          %s141 = scalar_lea.vmem [#allocation2], %s140
          %s143 = ssub.s32 128, 128
          %144 = vsyncadd %s138, %s143
          %s145 = smul.addr %s15, 128
          %s146 = scalar_lea.hbm %s0, %s145
          %s148 = sshll.u32 %s141, 4
          %s149 = int_to_ptr.vmem [resolvable:$true] %s148
          %151 = dma.hbm_to_vmem [thread:$0]  %s146, 128, %s149, %s138
        $region28: #{tpu_custom_call.1} parent=23 // pred_fallthru
          _
      $region24: #{tpu_custom_call.1} parent=5 // pred_fallthru
        _
      %p152 = scmp.le.s32.totalorder 1, %s15
      %p153 = scmp.lt.s32.totalorder %s15, 3
      %p154 = pnand %p152, %p153
      %p155 = pneg %p154
      // Predicated region
      $region29: #{tpu_custom_call.1} parent=5 // pred_check
        _
      $region30: #{tpu_custom_call.1} parent=5 // pred_check_branch
        %157 = sbr.rel (%p154) target = $region32
      $region31: #{tpu_custom_call.1} parent=5 // pred_region
        %s158 = ssub.s32 %s15, 1
        %s159 = sand.u32 %s28, 1
        %s160 = scalar_lea.sflag [#allocation3], %s159
        %s161 = sand.u32 %s28, 1
        %s162 = smul.addr %s161, 8
        %s163 = scalar_lea.vmem [#allocation2], %s162
        // Predicated region
        $region33: #{tpu_custom_call.1} parent=31 // pred_check
          %p164 = pneg %p41
        $region34: #{tpu_custom_call.1} parent=31 // pred_check_branch
          %166 = sbr.rel (%p164) target = $region36
        $region35: #{tpu_custom_call.1} parent=31 // pred_region
          %167 = dma.done %s160, 128
        $region36: #{tpu_custom_call.1} parent=31 // pred_fallthru
          _
        %s168 = sand.u32 %s28, 1
        %s169 = scalar_lea.sflag [#allocation3], %s168
        %s170 = sand.u32 %s28, 1
        %s171 = smul.addr %s170, 8
        %s172 = scalar_lea.vmem [#allocation2], %s171
        %p173 = pneg %p41
        %p174 = pneg %p38
        %p175 = pneg %p62
        %p176 = pneg %p59
        %p177 = pneg %p83
        %p178 = pneg %p80
        %p179 = pneg %p109
        %p180 = pneg %p106
        %s181 = sand.u32 %s96, 1
        %s182 = scalar_lea.sflag [#allocation4], %s181
        %s183 = sand.u32 %s96, 1
        %s184 = smul.addr %s183, 8
        %s185 = scalar_lea.vmem [#allocation5], %s184
        %v186 = vld [vmem:[%s163] sm:$0xff]
        %v187 = vmul.f32 %v186, %v186
        %vm188 = vcmask 261120
        %v189 = vsel %vm188, %v187, 0.0
        %190 = vadd.xlane.f32.xlu0 %v189
        %v191 = vpop.xlane.xlu0 %190
        %v192 = vmul.f32 %v191, 0.03125
        %v193 = vrsqrt.pop %v192
        %v194 = vmul.f32 %v192, %v193
        %vm195 = vcmp.eq.f32.partialorder %v192, inf
        %v196 = vsel %vm195, %v192, %v194
        %vm197 = vcmp.eq.f32.partialorder %v192, 0.0
        %v198 = vand.u32 %v192, 2147483648
        %v199 = vsel %vm197, %v198, %v196
        %v200 = vadd.f32 %v199, 1e-08
        %v201 = vrcp.pop %v200
        %v202 = vmul.f32 %v186, %v201
        %v203 = vld [vmem:[%s1] sm:$0x1]
        %v205 = vlaneseq
        %v206 = vshrl.u32 %v205, 7
        %v207 = vsub.s32 0, %v206
        %v208 = vrot.slane %v203, %v207
        %v210 = vmul.f32 %v202, %v208
        %v211 = vld [vmem:[%s2] sm:$0x1]
        %v213 = vlaneseq
        %v214 = vshrl.u32 %v213, 7
        %v215 = vsub.s32 0, %v214
        %v216 = vrot.slane %v211, %v215
        %v218 = vadd.f32 %v210, %v216
        %219 = vst.msk [vmem:[%s185] sm:$0xff] %vm188, %v218
        %s220 = sand.u32 %s96, 1
        %s221 = scalar_lea.sflag [#allocation4], %s220
        %s222 = sand.u32 %s96, 1
        %s223 = smul.addr %s222, 8
        %s224 = scalar_lea.vmem [#allocation5], %s223
        // Predicated region
        $region37: #{tpu_custom_call.1} parent=31 // pred_check
          %p225 = pneg %p106
        $region38: #{tpu_custom_call.1} parent=31 // pred_check_branch
          %227 = sbr.rel (%p225) target = $region40
        $region39: #{tpu_custom_call.1} parent=31 // pred_region
          %s229 = ssub.s32 128, 128
          %230 = vsyncadd %s221, %s229
          %s231 = smul.addr %s20, 128
          %s232 = scalar_lea.hbm %s3, %s231
          %s234 = sshll.u32 %s224, 4
          %s235 = int_to_ptr.vmem [resolvable:$true] %s234
          %237 = dma.vmem_to_hbm [thread:$0]  %s235, 128, %s232, %s221
        $region40: #{tpu_custom_call.1} parent=31 // pred_fallthru
          _
      $region32: #{tpu_custom_call.1} parent=5 // pred_fallthru
        _
      %p238 = scmp.le.s32.totalorder 2, %s15
      // Predicated region
      $region41: #{tpu_custom_call.1} parent=5 // pred_check
        %p239 = pneg %p238
      $region42: #{tpu_custom_call.1} parent=5 // pred_check_branch
        %241 = sbr.rel (%p239) target = $region44
      $region43: #{tpu_custom_call.1} parent=5 // pred_region
        %s242 = ssub.s32 %s15, 2
        // Predicated region
        $region45: #{tpu_custom_call.1} parent=43 // pred_check
          %p243 = pneg %p112
        $region46: #{tpu_custom_call.1} parent=43 // pred_check_branch
          %245 = sbr.rel (%p243) target = $region48
        $region47: #{tpu_custom_call.1} parent=43 // pred_region
          %s246 = sand.u32 %s97, 1
          %s247 = scalar_lea.sflag [#allocation4], %s246
          %s248 = sand.u32 %s97, 1
          %s249 = smul.addr %s248, 8
          %s250 = scalar_lea.vmem [#allocation5], %s249
          %251 = dma.done %s247, 128
        $region48: #{tpu_custom_call.1} parent=43 // pred_fallthru
          _
      $region44: #{tpu_custom_call.1} parent=5 // pred_fallthru
        _
    $region6: #{tpu_custom_call.1} parent=1 // loop_footer
      %s19 = sadd.s32 1, %s15
    $region7: #{tpu_custom_call.1} parent=1 // loop_footer_branch
      %14 = sbr.rel target = $region3
    $region8: #{tpu_custom_call.1} parent=1 // loop_exit
      _
    %252 = vsyncpa [#allocation3], 1
    %s253 = scalar_lea.sflag [#allocation3], 1
    %254 = vsyncpa %s253, 1
    %255 = vsyncpa [#allocation4], 1
    %s256 = scalar_lea.sflag [#allocation4], 1
    %257 = vsyncpa %s256, 1

</llo_original>
